<compile_context>
chip_gen: v5e
topology: v5e:2x2
jax: 0.10.0
libtpu: 0.0.40
codegen_flags: <defaults>
</compile_context>

<pallas_src>
import functools

import jax
import jax.numpy as jnp
from jax import lax
from jax.experimental import pallas as pl
from jax.experimental.pallas import tpu as pltpu


def _sinkhorn_kernel(x_ref, yT_ref, cost_ref, pi_ref, c_ref, *,
                     eps, max_iter, n_total):
    x = x_ref[...].astype(jnp.float32)    # (Nb, P1, D)
    yT = yT_ref[...].astype(jnp.float32)  # (Nb, D, P2)
    Nb, P1, _ = x.shape
    P2 = yT.shape[2]

    # Cost matrix C_ij = |x_i - y_j|^2 via ||x||^2 + ||y||^2 - 2 x.y (MXU),
    # clamped at 0 against cancellation.  Only Cs = -C/eps stays live.
    x2 = jnp.sum(x * x, axis=-1)   # (Nb, P1)
    y2 = jnp.sum(yT * yT, axis=1)  # (Nb, P2)  -- sublane reduce over D
    xy = jnp.einsum("npd,ndq->npq", x, yT,
                    preferred_element_type=jnp.float32)  # (Nb, P1, P2)
    C = jnp.maximum(x2[:, :, None] + y2[:, None, :] - 2.0 * xy, 0.0)
    Cs = C * (-1.0 / eps)          # = -C/eps; C itself is recovered at the end

    log_mu = jnp.log(1.0 / P1 + 1e-8)
    log_nu = jnp.log(1.0 / P2 + 1e-8)
    thresh = 0.1

    # ones vectors for MXU-offloaded logsumexp sums (batched matmuls).
    ones_q = jnp.ones((Nb, P2, 1), jnp.float32)
    ones_p = jnp.ones((Nb, 1, P1), jnp.float32)

    # mask zero-padded batch rows out of the convergence error.
    row_ids = lax.broadcasted_iota(jnp.int32, (Nb, 1), 0) + pl.program_id(0) * Nb
    valid_mask = (row_ids < n_total).astype(jnp.float32)          # (Nb, 1)
    n_valid = jnp.maximum(jnp.sum(valid_mask), 1.0)
    err_scale = jnp.float32(eps) / n_valid

    def cond(carry):
        it, err, _, _, _ = carry
        return jnp.logical_and(it < max_iter, err >= thresh)

    def body(carry):
        it, _, u_s, v_s, A = carry            # A = Cs + v_s (broadcast over P1)

        # u update: logsumexp over q (axis=-1); sum goes to the MXU.
        Mu = A + u_s[:, :, None]                                  # (Nb,P1,P2)
        mmax_q = jnp.max(Mu, axis=-1, keepdims=True)              # (Nb,P1,1)
        e_q = jnp.exp(Mu - mmax_q)
        s_q = jnp.einsum("npq,nqo->npo", e_q, ones_q,
                         preferred_element_type=jnp.float32)      # (Nb,P1,1)
        lse_q = mmax_q[..., 0] + jnp.log(s_q[..., 0])             # (Nb,P1)
        u_new = (log_mu - lse_q) + u_s

        # v update: logsumexp over p (axis=-2); sum goes to the MXU.
        Mv = A + u_new[:, :, None]                                # (Nb,P1,P2)
        mmax_p = jnp.max(Mv, axis=-2, keepdims=True)              # (Nb,1,P2)
        e_p = jnp.exp(Mv - mmax_p)
        s_p = jnp.einsum("nop,npq->noq", ones_p, e_p,
                         preferred_element_type=jnp.float32)      # (Nb,1,P2)
        lse_p = mmax_p[:, 0, :] + jnp.log(s_p[:, 0, :])           # (Nb,P2)
        v_new = (log_nu - lse_p) + v_s

        A_new = A + (v_new - v_s)[:, None, :]

        # err = mean over valid batch rows of sum_i |u - u1|, u = eps * u_s.
        err = jnp.sum(jnp.abs(u_new - u_s) * valid_mask) * err_scale
        return it + 1, err, u_new, v_new, A_new

    u0 = jnp.zeros((Nb, P1), jnp.float32)
    v0 = jnp.zeros((Nb, P2), jnp.float32)
    _, _, u_s, v_s, A = lax.while_loop(
        cond, body, (jnp.int32(0), jnp.float32(jnp.inf), u0, v0, Cs))

    pi = jnp.exp(A + u_s[:, :, None])               # exp(M(u, v))
    c_ref[...] = Cs * (-eps)                        # recover C
    pi_ref[...] = pi
    # cost = sum(pi * C) = -eps * sum(pi * Cs)
    cost = jnp.sum(jnp.sum(pi * Cs, axis=-1), axis=-1) * (-eps)   # (Nb,)
    cost_ref[...] = cost[None, :]                   # lane-dense block (1, Nb)


def _vmem_plan():
    """(vmem_limit_bytes, tile budget) per chip generation; v7x-safe fallback."""
    vmem_limit = 48 * 1024 * 1024
    budget = 36 * 1024 * 1024
    try:
        info = pltpu.get_tpu_info()
        cap = int(getattr(info, "vmem_capacity_bytes", 0) or 0)
        if cap >= 96 * 1024 * 1024:          # v5e / v6e: 128 MiB physical VMEM
            vmem_limit = 100 * 1024 * 1024
            budget = 72 * 1024 * 1024
    except Exception:
        pass                                  # conservative (v7x: 64 MiB)
    return vmem_limit, budget


def sinkhorn_distance(x, y, eps, max_iter, reduction="none",
                      batch_tile=None, min_tiles=1):
    """Pallas-backed SinkhornDistance.forward."""
    if x.ndim == 2:  # module also accepts unbatched (P, D) inputs
        cost, pi, C = sinkhorn_distance(x[None], y[None], eps, max_iter,
                                        "none", batch_tile, min_tiles)
        cost, pi, C = cost[0], pi[0], C[0]
        if reduction == "mean":
            cost = cost.mean()
        elif reduction == "sum":
            cost = cost.sum()
        return cost, pi, C

    assert x.ndim == 3 and y.ndim == 3 and x.shape[0] == y.shape[0]
    assert x.shape[2] == y.shape[2]
    N, P1, D = x.shape
    P2 = y.shape[1]
    x = x.astype(jnp.float32)
    yT = jnp.swapaxes(y.astype(jnp.float32), 1, 2)   # (N, D, P2): P2 on lanes

    vmem_limit, budget = _vmem_plan()
    if batch_tile is None:
        # Per-batch-element VMEM: ~5 live f32 (P1,P2) compute slabs + small
        # vectors, PLUS the double-buffered pipelined I/O blocks (x, yT in;
        # pi, C, cost out).
        compute = 5 * P1 * P2 + 4 * (P1 + P2)
        io = 2 * (P1 * D + D * P2) + 2 * (2 * P1 * P2 + 1)
        per_batch = 4 * (compute + io)
        batch_tile = max(1, min(N, budget // max(per_batch, 1)))
        if min_tiles > 1:
            # v7x megacore: keep >= min_tiles grid steps (changes early-exit
            # granularity -- see header comment).
            batch_tile = max(1, min(batch_tile, int(pl.cdiv(N, min_tiles))))
    Nb = int(batch_tile)

    num_tiles = int(pl.cdiv(N, Nb))
    N_pad = num_tiles * Nb
    if N_pad != N:
        pad = N_pad - N
        x = jnp.concatenate([x, jnp.zeros((pad, P1, D), x.dtype)], axis=0)
        yT = jnp.concatenate([yT, jnp.zeros((pad, D, P2), yT.dtype)], axis=0)

    kernel = functools.partial(_sinkhorn_kernel, eps=float(eps),
                               max_iter=int(max_iter), n_total=int(N))
    cost2d, pi, C = pl.pallas_call(
        kernel,
        grid=(num_tiles,),
        out_shape=(
            jax.ShapeDtypeStruct((num_tiles, Nb), jnp.float32),
            jax.ShapeDtypeStruct((N_pad, P1, P2), jnp.float32),
            jax.ShapeDtypeStruct((N_pad, P1, P2), jnp.float32),
        ),
        in_specs=[
            pl.BlockSpec((Nb, P1, D), lambda i: (i, 0, 0)),
            pl.BlockSpec((Nb, D, P2), lambda i: (i, 0, 0)),
        ],
        out_specs=(
            pl.BlockSpec((1, Nb), lambda i: (i, 0)),
            pl.BlockSpec((Nb, P1, P2), lambda i: (i, 0, 0)),
            pl.BlockSpec((Nb, P1, P2), lambda i: (i, 0, 0)),
        ),
        compiler_params=pltpu.CompilerParams(
            dimension_semantics=("parallel",),
            vmem_limit_bytes=vmem_limit,
        ),
    )(x, yT)

    cost = cost2d.reshape(-1)[:N]
    pi = pi[:N]
    C = C[:N]
    if reduction == "mean":
        cost = cost.mean()
    elif reduction == "sum":
        cost = cost.sum()
    return cost, pi, C


def sinkhorn_reference(x, y, eps, max_iter, reduction="none"):
    """Pure-JAX mirror of the PyTorch forward (elementwise cost, host break)."""
    N, P1, _ = x.shape
    P2 = y.shape[1]
    C = jnp.sum(jnp.abs(x[:, :, None, :] - y[:, None, :, :]) ** 2, axis=-1)

    mu = jnp.full((N, P1), 1.0 / P1, jnp.float32)
    nu = jnp.full((N, P2), 1.0 / P2, jnp.float32)
    u = jnp.zeros_like(mu)
    v = jnp.zeros_like(nu)

    def M(u, v):
        return (-C + u[:, :, None] + v[:, None, :]) / eps

    for _ in range(max_iter):
        u1 = u
        u = eps * (jnp.log(mu + 1e-8)
                   - jax.scipy.special.logsumexp(M(u, v), axis=-1)) + u
        v = eps * (jnp.log(nu + 1e-8)
                   - jax.scipy.special.logsumexp(
                       jnp.swapaxes(M(u, v), -2, -1), axis=-1)) + v
        err = jnp.mean(jnp.sum(jnp.abs(u - u1), axis=-1))
        if float(err) < 0.1:
            break

    pi = jnp.exp(M(u, v))
    cost = jnp.sum(pi * C, axis=(-2, -1))
    if reduction == "mean":
        cost = cost.mean()
    elif reduction == "sum":
        cost = cost.sum()
    return cost, pi, C


if __name__ == "__main__":
    key = jax.random.PRNGKey(0)
    kx, ky = jax.random.split(key)
    N, P1, P2, D = 2, 8, 16, 4
    x = jax.random.normal(kx, (N, P1, D), jnp.float32)
    y = jax.random.normal(ky, (N, P2, D), jnp.float32)
    eps, max_iter = 0.1, 100

    cost, pi, C = sinkhorn_distance(x, y, eps, max_iter, reduction="none")
    jax.block_until_ready((cost, pi, C))

    cost_r, pi_r, C_r = sinkhorn_reference(x, y, eps, max_iter, reduction="none")
    assert cost.shape == (N,) and pi.shape == (N, P1, P2) and C.shape == (N, P1, P2)
    assert jnp.allclose(C, C_r, rtol=1e-3, atol=1e-3)
    assert jnp.allclose(pi, pi_r, rtol=1e-3, atol=1e-3)
    assert jnp.allclose(cost, cost_r, rtol=1e-3, atol=1e-3)

    print("KERNEL_OK")
</pallas_src>

<mosaic_0001>
module attributes {stable_mosaic.version = 11 : i64} {
  func.func @_sinkhorn_kernel(%arg0: i32, %arg1: memref<2x8x4xf32, #tpu.memory_space<vmem>>, %arg2: memref<2x4x16xf32, #tpu.memory_space<vmem>>, %arg3: memref<1x2xf32, #tpu.memory_space<vmem>>, %arg4: memref<2x8x16xf32, #tpu.memory_space<vmem>>, %arg5: memref<2x8x16xf32, #tpu.memory_space<vmem>>) attributes {dimension_semantics = [#tpu.dimension_semantics<parallel>], iteration_bounds = array<i64: 1>, scalar_prefetch = 0 : i64, scratch_operands = 0 : i64, tpu.core_type = #tpu.core_type<tc>, window_params = [{transform_indices = @transform_0, window_bounds = array<i64: 2, 8, 4>}, {transform_indices = @transform_1, window_bounds = array<i64: 2, 4, 16>}, {transform_indices = @transform_2, window_bounds = array<i64: 1, 2>}, {transform_indices = @transform_3, window_bounds = array<i64: 2, 8, 16>}, {transform_indices = @transform_4, window_bounds = array<i64: 2, 8, 16>}]} {
    %c0 = arith.constant 0 : index
    %c0_0 = arith.constant 0 : index
    %c0_1 = arith.constant 0 : index
    %0 = vector.load %arg1[%c0, %c0_0, %c0_1] : memref<2x8x4xf32, #tpu.memory_space<vmem>>, vector<2x8x4xf32>
    %c0_2 = arith.constant 0 : index
    %c0_3 = arith.constant 0 : index
    %c0_4 = arith.constant 0 : index
    %1 = vector.load %arg2[%c0_2, %c0_3, %c0_4] : memref<2x4x16xf32, #tpu.memory_space<vmem>>, vector<2x4x16xf32>
    %2 = arith.mulf %0, %0 : vector<2x8x4xf32>
    %cst = arith.constant dense<0.000000e+00> : vector<2x8xf32>
    %3 = vector.multi_reduction <add>, %2, %cst [2] : vector<2x8x4xf32> to vector<2x8xf32>
    %4 = arith.mulf %1, %1 : vector<2x4x16xf32>
    %cst_5 = arith.constant dense<0.000000e+00> : vector<2x16xf32>
    %5 = vector.multi_reduction <add>, %4, %cst_5 [1] : vector<2x4x16xf32> to vector<2x16xf32>
    "tpu.trace_start"() <{level = 10 : i32, message = "npd,ndq->npq"}> : () -> ()
    %cst_6 = arith.constant dense<0.000000e+00> : vector<2x8x16xf32>
    %6 = tpu.matmul %0, %1, %cst_6 {dimension_numbers = #tpu.dot_dimension_numbers<[2], [1], [1], [2], [0, 0, 0, 1, 1, 2], [0], [0]>} : vector<2x8x4xf32>, vector<2x4x16xf32>, vector<2x8x16xf32> -> vector<2x8x16xf32>
    "tpu.trace_stop"() : () -> ()
    %7 = vector.shape_cast %3 : vector<2x8xf32> to vector<2x8x1xf32>
    %8 = vector.shape_cast %5 : vector<2x16xf32> to vector<2x1x16xf32>
    %9 = vector.broadcast %7 : vector<2x8x1xf32> to vector<2x8x16xf32>
    %10 = vector.broadcast %8 : vector<2x1x16xf32> to vector<2x8x16xf32>
    %11 = arith.addf %9, %10 : vector<2x8x16xf32>
    %cst_7 = arith.constant 2.000000e+00 : f32
    %12 = vector.broadcast %cst_7 : f32 to vector<2x8x16xf32>
    %13 = arith.mulf %12, %6 : vector<2x8x16xf32>
    %14 = arith.subf %11, %13 : vector<2x8x16xf32>
    %cst_8 = arith.constant 0.000000e+00 : f32
    %15 = vector.broadcast %cst_8 : f32 to vector<2x8x16xf32>
    %16 = arith.maximumf %14, %15 : vector<2x8x16xf32>
    %cst_9 = arith.constant -1.000000e+01 : f32
    %17 = vector.broadcast %cst_9 : f32 to vector<2x8x16xf32>
    %18 = arith.mulf %16, %17 : vector<2x8x16xf32>
    %cst_10 = arith.constant 0.125000015 : f32
    %19 = math.log %cst_10 : f32
    %cst_11 = arith.constant 0.0625000075 : f32
    %20 = math.log %cst_11 : f32
    %cst_12 = arith.constant 1.000000e+00 : f32
    %21 = vector.broadcast %cst_12 : f32 to vector<2x16x1xf32>
    %cst_13 = arith.constant 1.000000e+00 : f32
    %22 = vector.broadcast %cst_13 : f32 to vector<2x1x8xf32>
    %23 = tpu.iota {dimensions = array<i32: 0>} : vector<2x1xi32>
    %c2_i32 = arith.constant 2 : i32
    %24 = arith.muli %arg0, %c2_i32 : i32
    %25 = vector.broadcast %24 : i32 to vector<2x1xi32>
    %26 = arith.addi %23, %25 : vector<2x1xi32>
    %c2_i32_14 = arith.constant 2 : i32
    %27 = vector.broadcast %c2_i32_14 : i32 to vector<2x1xi32>
    %28 = arith.cmpi slt, %26, %27 : vector<2x1xi32>
    %29 = arith.extui %28 : vector<2x1xi1> to vector<2x1xi32>
    %30 = arith.sitofp %29 : vector<2x1xi32> to vector<2x1xf32>
    %31 = vector.shape_cast %30 : vector<2x1xf32> to vector<1x2x1xf32>
    %cst_15 = arith.constant dense<0.000000e+00> : vector<1xf32>
    %32 = vector.multi_reduction <add>, %31, %cst_15 [1, 2] : vector<1x2x1xf32> to vector<1xf32>
    %33 = vector.shape_cast %32 : vector<1xf32> to vector<1x1x1xf32>
    %34 = vector.extract %33[0, 0, 0] : f32 from vector<1x1x1xf32>
    %cst_16 = arith.constant 1.000000e+00 : f32
    %35 = arith.maximumf %34, %cst_16 : f32
    %cst_17 = arith.constant 1.000000e-01 : f32
    %36 = arith.divf %cst_17, %35 : f32
    %cst_18 = arith.constant 0.000000e+00 : f32
    %37 = vector.broadcast %cst_18 : f32 to vector<2x8xf32>
    %cst_19 = arith.constant 0.000000e+00 : f32
    %38 = vector.broadcast %cst_19 : f32 to vector<2x16xf32>
    %c0_i32 = arith.constant 0 : i32
    %cst_20 = arith.constant 0x7F800000 : f32
    %39:5 = scf.while (%arg6 = %c0_i32, %arg7 = %cst_20, %arg8 = %37, %arg9 = %38, %arg10 = %18) : (i32, f32, vector<2x8xf32>, vector<2x16xf32>, vector<2x8x16xf32>) -> (i32, f32, vector<2x8xf32>, vector<2x16xf32>, vector<2x8x16xf32>) {
      %c100_i32 = arith.constant 100 : i32
      %55 = arith.cmpi slt, %arg6, %c100_i32 : i32
      %cst_33 = arith.constant 1.000000e-01 : f32
      %56 = arith.cmpf oge, %arg7, %cst_33 : f32
      %57 = arith.andi %55, %56 : i1
      scf.condition(%57) %arg6, %arg7, %arg8, %arg9, %arg10 : i32, f32, vector<2x8xf32>, vector<2x16xf32>, vector<2x8x16xf32>
    } do {
    ^bb0(%arg6: i32, %arg7: f32, %arg8: vector<2x8xf32>, %arg9: vector<2x16xf32>, %arg10: vector<2x8x16xf32>):
      %55 = vector.shape_cast %arg8 : vector<2x8xf32> to vector<2x8x1xf32>
      %56 = vector.broadcast %55 : vector<2x8x1xf32> to vector<2x8x16xf32>
      %57 = arith.addf %arg10, %56 : vector<2x8x16xf32>
      %cst_33 = arith.constant dense<0xFF800000> : vector<2x8xf32>
      %58 = vector.multi_reduction <maximumf>, %57, %cst_33 [2] : vector<2x8x16xf32> to vector<2x8xf32>
      %59 = vector.shape_cast %58 : vector<2x8xf32> to vector<2x8x1xf32>
      %60 = vector.broadcast %59 : vector<2x8x1xf32> to vector<2x8x16xf32>
      %61 = arith.subf %57, %60 : vector<2x8x16xf32>
      %62 = math.exp %61 : vector<2x8x16xf32>
      "tpu.trace_start"() <{level = 10 : i32, message = "npq,nqo->npo"}> : () -> ()
      %cst_34 = arith.constant dense<0.000000e+00> : vector<2x8x1xf32>
      %63 = tpu.matmul %62, %21, %cst_34 {dimension_numbers = #tpu.dot_dimension_numbers<[2], [1], [1], [2], [0, 0, 0, 1, 1, 2], [0], [0]>} : vector<2x8x16xf32>, vector<2x16x1xf32>, vector<2x8x1xf32> -> vector<2x8x1xf32>
      "tpu.trace_stop"() : () -> ()
      %64 = vector.shape_cast %59 : vector<2x8x1xf32> to vector<2x8xf32>
      %65 = vector.shape_cast %63 : vector<2x8x1xf32> to vector<2x8xf32>
      %66 = math.log %65 : vector<2x8xf32>
      %67 = arith.addf %64, %66 : vector<2x8xf32>
      %68 = vector.broadcast %19 : f32 to vector<2x8xf32>
      %69 = arith.subf %68, %67 : vector<2x8xf32>
      %70 = arith.addf %69, %arg8 : vector<2x8xf32>
      %71 = vector.shape_cast %70 : vector<2x8xf32> to vector<2x8x1xf32>
      %72 = vector.broadcast %71 : vector<2x8x1xf32> to vector<2x8x16xf32>
      %73 = arith.addf %arg10, %72 : vector<2x8x16xf32>
      %cst_35 = arith.constant dense<0xFF800000> : vector<2x16xf32>
      %74 = vector.multi_reduction <maximumf>, %73, %cst_35 [1] : vector<2x8x16xf32> to vector<2x16xf32>
      %75 = vector.shape_cast %74 : vector<2x16xf32> to vector<2x1x16xf32>
      %76 = vector.broadcast %75 : vector<2x1x16xf32> to vector<2x8x16xf32>
      %77 = arith.subf %73, %76 : vector<2x8x16xf32>
      %78 = math.exp %77 : vector<2x8x16xf32>
      "tpu.trace_start"() <{level = 10 : i32, message = "nop,npq->noq"}> : () -> ()
      %cst_36 = arith.constant dense<0.000000e+00> : vector<2x1x16xf32>
      %79 = tpu.matmul %22, %78, %cst_36 {dimension_numbers = #tpu.dot_dimension_numbers<[2], [1], [1], [2], [0, 0, 0, 1, 1, 2], [0], [0]>} : vector<2x1x8xf32>, vector<2x8x16xf32>, vector<2x1x16xf32> -> vector<2x1x16xf32>
      "tpu.trace_stop"() : () -> ()
      %80 = vector.shape_cast %75 : vector<2x1x16xf32> to vector<2x16xf32>
      %81 = vector.shape_cast %79 : vector<2x1x16xf32> to vector<2x16xf32>
      %82 = math.log %81 : vector<2x16xf32>
      %83 = arith.addf %80, %82 : vector<2x16xf32>
      %84 = vector.broadcast %20 : f32 to vector<2x16xf32>
      %85 = arith.subf %84, %83 : vector<2x16xf32>
      %86 = arith.addf %85, %arg9 : vector<2x16xf32>
      %87 = arith.subf %86, %arg9 : vector<2x16xf32>
      %88 = vector.shape_cast %87 : vector<2x16xf32> to vector<2x1x16xf32>
      %89 = vector.broadcast %88 : vector<2x1x16xf32> to vector<2x8x16xf32>
      %90 = arith.addf %arg10, %89 : vector<2x8x16xf32>
      %91 = arith.subf %70, %arg8 : vector<2x8xf32>
      %92 = math.absf %91 : vector<2x8xf32>
      %93 = vector.broadcast %30 : vector<2x1xf32> to vector<2x8xf32>
      %94 = arith.mulf %92, %93 : vector<2x8xf32>
      %95 = vector.shape_cast %94 : vector<2x8xf32> to vector<1x2x8xf32>
      %cst_37 = arith.constant dense<0.000000e+00> : vector<1xf32>
      %96 = vector.multi_reduction <add>, %95, %cst_37 [1, 2] : vector<1x2x8xf32> to vector<1xf32>
      %97 = vector.shape_cast %96 : vector<1xf32> to vector<1x1x1xf32>
      %98 = vector.extract %97[0, 0, 0] : f32 from vector<1x1x1xf32>
      %99 = arith.mulf %98, %36 : f32
      %c1_i32 = arith.constant 1 : i32
      %100 = arith.addi %arg6, %c1_i32 : i32
      scf.yield %100, %99, %70, %86, %90 : i32, f32, vector<2x8xf32>, vector<2x16xf32>, vector<2x8x16xf32>
    }
    %40 = vector.shape_cast %39#2 : vector<2x8xf32> to vector<2x8x1xf32>
    %41 = vector.broadcast %40 : vector<2x8x1xf32> to vector<2x8x16xf32>
    %42 = arith.addf %39#4, %41 : vector<2x8x16xf32>
    %43 = math.exp %42 : vector<2x8x16xf32>
    %cst_21 = arith.constant -1.000000e-01 : f32
    %44 = vector.broadcast %cst_21 : f32 to vector<2x8x16xf32>
    %45 = arith.mulf %18, %44 : vector<2x8x16xf32>
    %c0_22 = arith.constant 0 : index
    %c0_23 = arith.constant 0 : index
    %c0_24 = arith.constant 0 : index
    %46 = vector.load %arg5[%c0_22, %c0_23, %c0_24] : memref<2x8x16xf32, #tpu.memory_space<vmem>>, vector<2x8x16xf32>
    tpu.vector_store %arg5[%c0_22, %c0_23, %c0_24], %45 {strides = array<i32>} : memref<2x8x16xf32, #tpu.memory_space<vmem>>, vector<2x8x16xf32>,
    %c0_25 = arith.constant 0 : index
    %c0_26 = arith.constant 0 : index
    %c0_27 = arith.constant 0 : index
    %47 = vector.load %arg4[%c0_25, %c0_26, %c0_27] : memref<2x8x16xf32, #tpu.memory_space<vmem>>, vector<2x8x16xf32>
    tpu.vector_store %arg4[%c0_25, %c0_26, %c0_27], %43 {strides = array<i32>} : memref<2x8x16xf32, #tpu.memory_space<vmem>>, vector<2x8x16xf32>,
    %48 = arith.mulf %43, %18 : vector<2x8x16xf32>
    %cst_28 = arith.constant dense<0.000000e+00> : vector<2x8xf32>
    %49 = vector.multi_reduction <add>, %48, %cst_28 [2] : vector<2x8x16xf32> to vector<2x8xf32>
    %cst_29 = arith.constant dense<0.000000e+00> : vector<2xf32>
    %50 = vector.multi_reduction <add>, %49, %cst_29 [1] : vector<2x8xf32> to vector<2xf32>
    %cst_30 = arith.constant -1.000000e-01 : f32
    %51 = vector.broadcast %cst_30 : f32 to vector<2xf32>
    %52 = arith.mulf %50, %51 : vector<2xf32>
    %53 = vector.shape_cast %52 : vector<2xf32> to vector<1x2xf32>
    %c0_31 = arith.constant 0 : index
    %c0_32 = arith.constant 0 : index
    %54 = vector.load %arg3[%c0_31, %c0_32] : memref<1x2xf32, #tpu.memory_space<vmem>>, vector<1x2xf32>
    tpu.vector_store %arg3[%c0_31, %c0_32], %53 {strides = array<i32>} : memref<1x2xf32, #tpu.memory_space<vmem>>, vector<1x2xf32>,
    return
  }
  func.func @transform_0(%arg0: i32) -> (i32, i32, i32) {
    %c0_i32 = arith.constant 0 : i32
    %c0_i32_0 = arith.constant 0 : i32
    %c0_i32_1 = arith.constant 0 : i32
    return %arg0, %c0_i32, %c0_i32_0 : i32, i32, i32
  }
  func.func @transform_1(%arg0: i32) -> (i32, i32, i32) {
    %c0_i32 = arith.constant 0 : i32
    %c0_i32_0 = arith.constant 0 : i32
    %c0_i32_1 = arith.constant 0 : i32
    return %arg0, %c0_i32, %c0_i32_0 : i32, i32, i32
  }
  func.func @transform_2(%arg0: i32) -> (i32, i32) {
    %c0_i32 = arith.constant 0 : i32
    %c0_i32_0 = arith.constant 0 : i32
    return %arg0, %c0_i32 : i32, i32
  }
  func.func @transform_3(%arg0: i32) -> (i32, i32, i32) {
    %c0_i32 = arith.constant 0 : i32
    %c0_i32_0 = arith.constant 0 : i32
    %c0_i32_1 = arith.constant 0 : i32
    return %arg0, %c0_i32, %c0_i32_0 : i32, i32, i32
  }
  func.func @transform_4(%arg0: i32) -> (i32, i32, i32) {
    %c0_i32 = arith.constant 0 : i32
    %c0_i32_0 = arith.constant 0 : i32
    %c0_i32_1 = arith.constant 0 : i32
    return %arg0, %c0_i32, %c0_i32_0 : i32, i32, i32
  }
}

</mosaic_0001>

<llo_original>
// kernel: tpu_custom_call.1
$region0: #{tpu_custom_call.1}
  #allocation0 [shape = 'u32[]', space=smem, size = 0x4, offset = 0x4, fixed_abs, tag = 'smem constant byte address 0x4 - core index']
  #allocation1 [shape = 'u32[72,128]{1,0:T(1,128)}', space=vmem, size = 0x9000, scoped, tag = 'internal scratch']
  %s0 = inlined_call_operand.vmem [shape: f32[2,8,4], index: 0, kind: input, shape index: {}]
  %s1 = inlined_call_operand.vmem [shape: f32[2,4,16], index: 1, kind: input, shape index: {}]
  %s2 = inlined_call_operand.hbm [shape: f32[1,2], index: 2, kind: output, shape index: {0}]
  %s3 = inlined_call_operand.hbm [shape: f32[2,8,16], index: 3, kind: output, shape index: {1}]
  %s4 = inlined_call_operand.hbm [shape: f32[2,8,16], index: 4, kind: output, shape index: {2}]
  %5 = xla_tuple %s2, %s3, %s4
  %s6 = sld [smem:[#allocation0]]
  $region41: #{tpu_custom_call.1} parent=0
    _
  %s8 = ssub.s32 1, %s6
  %s9 = scalar_select 0, %s8, %s6
  $region1: #{tpu_custom_call.1} parent=0
    #allocation2 [shape = 'u8[512]{0}', space=vmem, size = 0x400, scoped, tag = 'output window, operand 0, single buffered']
    #allocation3 [shape = 's32[1]{0}', space=sflag, size = 0x4, scoped, tag = 'scoped memory for tpu_custom_call.1']
    #allocation4 [shape = 'u8[8192]{0}', space=vmem, size = 0x2000, scoped, tag = 'output window, operand 1, single buffered']
    #allocation5 [shape = 's32[1]{0}', space=sflag, size = 0x4, scoped, tag = 'scoped memory for tpu_custom_call.1']
    #allocation6 [shape = 'u8[8192]{0}', space=vmem, size = 0x2000, scoped, tag = 'output window, operand 2, single buffered']
    %10 = vsyncpa [#allocation3], 0
    %11 = vsyncpa [#allocation5], 0
    // Predicated region
    $region2: #{tpu_custom_call.1} parent=1 // pred_check
      _
    $region3: #{tpu_custom_call.1} parent=1 // pred_check_branch
      %13 = sbr.rel (0) target = $region5
    $region4: #{tpu_custom_call.1} parent=1 // pred_region
      _
    $region5: #{tpu_custom_call.1} parent=1 // pred_fallthru
      _
    // Predicated region
    $region6: #{tpu_custom_call.1} parent=1 // pred_check
      _
    $region7: #{tpu_custom_call.1} parent=1 // pred_check_branch
      %15 = sbr.rel (0) target = $region9
    $region8: #{tpu_custom_call.1} parent=1 // pred_region
      _
    $region9: #{tpu_custom_call.1} parent=1 // pred_fallthru
      _
    %v16 = vld [vmem:[%s0] sm:$0xff]
    %v17 = vld [vmem:[%s0 + $0x8] sm:$0xff]
    %v18 = vld [vmem:[%s1] sm:$0xf]
    %v19 = vld [vmem:[%s1 + $0x4] sm:$0xf]
    %v20 = vmul.f32 %v16, %v16
    %v21 = vmul.f32 %v17, %v17
    %vm22 = vcmask 31744
    %v23 = vsel %vm22, %v20, 0.0
    %24 = vadd.xlane.f32.xlu0 %v23
    %v25 = vpop.xlane.xlu0 %24
    %v26 = vsel %vm22, %v21, 0.0
    %27 = vadd.xlane.f32.xlu0 %v26
    %v28 = vpop.xlane.xlu0 %27
    %v29 = vmul.f32 %v18, %v18
    %v30 = vmul.f32 %v19, %v19
    %vm31 = vcmask 125952
    %v32 = vsel %vm31, %v29, 0.0
    %v33 = vrot.slane %v32, 4
    %v34 = vadd.f32 %v32, %v33
    %v35 = vrot.slane %v34, 2
    %v36 = vadd.f32 %v34, %v35
    %v37 = vrot.slane %v36, 1
    %v38 = vadd.f32 %v36, %v37
    %v39 = vsel %vm31, %v30, 0.0
    %v40 = vrot.slane %v39, 4
    %v41 = vadd.f32 %v39, %v40
    %v42 = vrot.slane %v41, 2
    %v43 = vadd.f32 %v41, %v42
    %v44 = vrot.slane %v43, 1
    %v45 = vadd.f32 %v43, %v44
    %v47 = vsel %vm22, %v16, 0
    %vm49 = vcmask 1043456
    %v51 = vsel %vm49, %v18, 0
    %53 = vmatpush.msra.mxu0 0.0
    %54 = vmatpush.msra.mxu0 0.0
    %55 = vmatpush.msra.mxu0 0.0
    %56 = vmatpush.msra.mxu0 0.0
    %57 = vmatpush.msra.mxu0 0.0
    %58 = vmatpush.msra.mxu0 0.0
    %59 = vmatpush.msra.mxu0 0.0
    %60 = vmatpush.msra.mxu0 0.0
    %61 = vmatpush.msra.mxu0 0.0
    %62 = vmatpush.msra.mxu0 0.0
    %63 = vmatpush.msra.mxu0 0.0
    %64 = vmatpush.msra.mxu0 0.0
    %65 = vmatpush.msra.mxu0 0.0
    %66 = vmatpush.msra.mxu0 0.0
    %67 = vmatpush.msra.mxu0 0.0
    %68 = vmatpush.msra.mxu0 %v51
    %69 = vmatmul.f32.gmra.mxu0 %v47
    %v70 = vpop.f32.mrf.mxu0
    %v71 = vadd.f32 0.0, %v70
    %72 = vdwg.mxu0
    %v74 = vsel %vm22, %v17, 0
    %v77 = vsel %vm49, %v19, 0
    %79 = vmatpush.msra.mxu0 0.0
    %80 = vmatpush.msra.mxu0 0.0
    %81 = vmatpush.msra.mxu0 0.0
    %82 = vmatpush.msra.mxu0 0.0
    %83 = vmatpush.msra.mxu0 0.0
    %84 = vmatpush.msra.mxu0 0.0
    %85 = vmatpush.msra.mxu0 0.0
    %86 = vmatpush.msra.mxu0 0.0
    %87 = vmatpush.msra.mxu0 0.0
    %88 = vmatpush.msra.mxu0 0.0
    %89 = vmatpush.msra.mxu0 0.0
    %90 = vmatpush.msra.mxu0 0.0
    %91 = vmatpush.msra.mxu0 0.0
    %92 = vmatpush.msra.mxu0 0.0
    %93 = vmatpush.msra.mxu0 0.0
    %94 = vmatpush.msra.mxu0 %v77
    %95 = vmatmul.f32.gmra.mxu0 %v74
    %v96 = vpop.f32.mrf.mxu0
    %v97 = vadd.f32 0.0, %v96
    %98 = vdwg.mxu0
    %v99 = vadd.f32 %v25, %v38
    %v100 = vadd.f32 %v28, %v45
    %v101 = vmul.f32 %v71, 2.0
    %v102 = vmul.f32 %v97, 2.0
    %v103 = vsub.f32 %v99, %v101
    %v104 = vsub.f32 %v100, %v102
    %v105 = vmax.f32 %v103, 0.0
    %v106 = vmax.f32 %v104, 0.0
    %v107 = vmul.f32 %v105, -10.0
    %v108 = vmul.f32 %v106, -10.0
    %v109 = vlaneseq
    %v110 = vshrl.u32 %v109, 7
    %s111 = smul.u32 0, 2
    %v112 = vstv %s111
    %v113 = vadd.s32 %v110, %v112
    %vm114 = vcmp.lt.s32.totalorder %v113, 2
    %v115 = vsel %vm114, 1, 0
    %v116 = vcvt.s32.f32 %v115
    %vm117 = vcmask 1024
    %v118 = vsel %vm117, %v116, 0.0
    %119 = vadd.xlane.f32.xlu0 %v118
    %v120 = vpop.xlane.xlu0 %119
    %v121 = vrot.slane %v120, 4
    %v122 = vadd.f32 %v120, %v121
    %v123 = vrot.slane %v122, 2
    %v124 = vadd.f32 %v122, %v123
    %v125 = vrot.slane %v124, 1
    %v126 = vadd.f32 %v124, %v125
    %s127 = vtos %v126
    %s128 = smax.f32 %s127, 1.0
    %v129 = vstv %s128
    %v130 = vrcp.pop %v129
    %v131 = vmul.f32 %v129, %v130
    %v132 = vsub.f32 1.0, %v131
    %v133 = vmul.f32 %v130, %v132
    %v134 = vadd.f32 %v130, %v133
    %vm135 = vweird.f32 %v129
    %vm136 = vweird.f32 %v130
    %vm137 = vmor %vm135, %vm136
    %v138 = vsel %vm137, %v130, %v134
    %v139 = vand.u32 2147483647, %v129
    %vm140 = vcmp.eq.f32.partialorder %v139, 8.507059e+37
    %v141 = vand.u32 %v129, 2147483648
    %v142 = vor.u32 1.1754944e-38, %v141
    %v143 = vsel %vm140, %v142, %v138
    %s144 = vtos %v143
    %s145 = smul.f32 0.1, %s144
    // While loop
    $region10: #{tpu_custom_call.1} parent=1 // loop_pre_header
      _
    $region11: #{tpu_custom_call.1} parent=1 // loop_header
      %s147 = sphi 0, %s372
      %s148 = sphi inf, %s371
      %v149 = vphi 0.0, %v240
      %v150 = vphi 0.0, %v241
      %v151 = vphi 0.0, %v326
      %v152 = vphi 0.0, %v327
      %v153 = vphi %v107, %v332
      %v154 = vphi %v108, %v333
      %p155 = scmp.lt.s32.totalorder %s147, 100
      %p156 = scmp.ge.f32.partialorder %s148, 0.1
      %p157 = pnand %p155, %p156
      %p158 = pneg %p157
    $region12: #{tpu_custom_call.1} parent=1 // loop_header_branch
      %160 = sbr.rel (%p157) target = $region16
    $region13: #{tpu_custom_call.1} parent=1 // loop_body
      %162 = vset.pattern.permute.xlu0 0
      %163 = vperm.xlu0 %162, %v149
      %v164 = vpop.permute.xlu0 %163
      %167 = vset.pattern.permute.xlu0 0
      %168 = vperm.xlu0 %167, %v150
      %v169 = vpop.permute.xlu0 %168
      %v171 = vadd.f32 %v153, %v164
      %v172 = vadd.f32 %v154, %v169
      %vm173 = vcmask 130048
      %v174 = vsel %vm173, %v171, -inf
      %175 = vmax.xlane.f32.xlu0 %v174
      %v176 = vpop.xlane.xlu0 %175
      %v177 = vsel %vm173, %v172, -inf
      %178 = vmax.xlane.f32.xlu0 %v177
      %v179 = vpop.xlane.xlu0 %178
      %v180 = vsub.f32 %v171, %v176
      %v181 = vsub.f32 %v172, %v179
      %v182 = vmul.f32 %v180, 1.442695
      %v183 = vpow.pop %v182
      %v184 = vmul.f32 %v181, 1.442695
      %v185 = vpow.pop %v184
      %v187 = vsel %vm173, %v183, 0
      %189 = vmatpush.msra.mxu0 0.0
      %190 = vmatpush.msra.mxu0 0.0
      %191 = vmatpush.msra.mxu0 0.0
      %192 = vmatpush.msra.mxu0 0.0
      %193 = vmatpush.msra.mxu0 0.0
      %194 = vmatpush.msra.mxu0 0.0
      %195 = vmatpush.msra.mxu0 0.0
      %196 = vmatpush.msra.mxu0 0.0
      %197 = vmatpush.msra.mxu0 0.0
      %198 = vmatpush.msra.mxu0 0.0
      %199 = vmatpush.msra.mxu0 0.0
      %200 = vmatpush.msra.mxu0 0.0
      %201 = vmatpush.msra.mxu0 0.0
      %202 = vmatpush.msra.mxu0 0.0
      %203 = vmatpush.msra.mxu0 1.0
      %204 = vmatpush.msra.mxu0 1.0
      %205 = vmatmul.f32.gmra.mxu0 %v187
      %v206 = vpop.f32.mrf.mxu0
      %v207 = vadd.f32 0.0, %v206
      %208 = vdwg.mxu0
      %v210 = vsel %vm173, %v185, 0
      %212 = vmatpush.msra.mxu0 0.0
      %213 = vmatpush.msra.mxu0 0.0
      %214 = vmatpush.msra.mxu0 0.0
      %215 = vmatpush.msra.mxu0 0.0
      %216 = vmatpush.msra.mxu0 0.0
      %217 = vmatpush.msra.mxu0 0.0
      %218 = vmatpush.msra.mxu0 0.0
      %219 = vmatpush.msra.mxu0 0.0
      %220 = vmatpush.msra.mxu0 0.0
      %221 = vmatpush.msra.mxu0 0.0
      %222 = vmatpush.msra.mxu0 0.0
      %223 = vmatpush.msra.mxu0 0.0
      %224 = vmatpush.msra.mxu0 0.0
      %225 = vmatpush.msra.mxu0 0.0
      %226 = vmatpush.msra.mxu0 1.0
      %227 = vmatpush.msra.mxu0 1.0
      %228 = vmatmul.f32.gmra.mxu0 %v210
      %v229 = vpop.f32.mrf.mxu0
      %v230 = vadd.f32 0.0, %v229
      %231 = vdwg.mxu0
      %v232 = vlog2.pop %v207
      %v233 = vmul.f32 %v232, 0.6931472
      %v234 = vlog2.pop %v230
      %v235 = vmul.f32 %v234, 0.6931472
      %v236 = vadd.f32 %v176, %v233
      %v237 = vadd.f32 %v179, %v235
      %v238 = vsub.f32 -2.0794413, %v236
      %v239 = vsub.f32 -2.0794413, %v237
      %v240 = vadd.f32 %v238, %v149
      %v241 = vadd.f32 %v239, %v150
      %243 = vset.pattern.permute.xlu0 0
      %244 = vperm.xlu0 %243, %v240
      %v245 = vpop.permute.xlu0 %244
      %248 = vset.pattern.permute.xlu0 0
      %249 = vperm.xlu0 %248, %v241
      %v250 = vpop.permute.xlu0 %249
      %v252 = vadd.f32 %v153, %v245
      %v253 = vadd.f32 %v154, %v250
      %v254 = vsel %vm173, %v252, -inf
      %v255 = vrot.slane %v254, 4
      %v256 = vmax.f32 %v254, %v255
      %v257 = vrot.slane %v256, 2
      %v258 = vmax.f32 %v256, %v257
      %v259 = vrot.slane %v258, 1
      %v260 = vmax.f32 %v258, %v259
      %v261 = vsel %vm173, %v253, -inf
      %v262 = vrot.slane %v261, 4
      %v263 = vmax.f32 %v261, %v262
      %v264 = vrot.slane %v263, 2
      %v265 = vmax.f32 %v263, %v264
      %v266 = vrot.slane %v265, 1
      %v267 = vmax.f32 %v265, %v266
      %v268 = vsub.f32 %v252, %v260
      %v269 = vsub.f32 %v253, %v267
      %v270 = vmul.f32 %v268, 1.442695
      %v271 = vpow.pop %v270
      %v272 = vmul.f32 %v269, 1.442695
      %v273 = vpow.pop %v272
      %vm274 = vcmask 64512
      %v276 = vsel %vm274, 1.0, 0
      %278 = vmatpush.msra.mxu0 0.0
      %279 = vmatpush.msra.mxu0 0.0
      %280 = vmatpush.msra.mxu0 0.0
      %281 = vmatpush.msra.mxu0 0.0
      %282 = vmatpush.msra.mxu0 0.0
      %283 = vmatpush.msra.mxu0 0.0
      %284 = vmatpush.msra.mxu0 0.0
      %285 = vmatpush.msra.mxu0 0.0
      %286 = vmatpush.msra.mxu0 0.0
      %287 = vmatpush.msra.mxu0 0.0
      %288 = vmatpush.msra.mxu0 0.0
      %289 = vmatpush.msra.mxu0 0.0
      %290 = vmatpush.msra.mxu0 0.0
      %291 = vmatpush.msra.mxu0 0.0
      %292 = vmatpush.msra.mxu0 0.0
      %293 = vmatpush.msra.mxu0 %v271
      %294 = vmatmul.f32.gmra.mxu0 %v276
      %v295 = vpop.f32.mrf.mxu0
      %v296 = vadd.f32 0.0, %v295
      %297 = vdwg.mxu0
      %298 = vmatpush.msra.mxu0 0.0
      %299 = vmatpush.msra.mxu0 0.0
      %300 = vmatpush.msra.mxu0 0.0
      %301 = vmatpush.msra.mxu0 0.0
      %302 = vmatpush.msra.mxu0 0.0
      %303 = vmatpush.msra.mxu0 0.0
      %304 = vmatpush.msra.mxu0 0.0
      %305 = vmatpush.msra.mxu0 0.0
      %306 = vmatpush.msra.mxu0 0.0
      %307 = vmatpush.msra.mxu0 0.0
      %308 = vmatpush.msra.mxu0 0.0
      %309 = vmatpush.msra.mxu0 0.0
      %310 = vmatpush.msra.mxu0 0.0
      %311 = vmatpush.msra.mxu0 0.0
      %312 = vmatpush.msra.mxu0 0.0
      %313 = vmatpush.msra.mxu0 %v273
      %314 = vmatmul.f32.gmra.mxu0 %v276
      %v315 = vpop.f32.mrf.mxu0
      %v316 = vadd.f32 0.0, %v315
      %317 = vdwg.mxu0
      %v318 = vlog2.pop %v296
      %v319 = vmul.f32 %v318, 0.6931472
      %v320 = vlog2.pop %v316
      %v321 = vmul.f32 %v320, 0.6931472
      %v322 = vadd.f32 %v260, %v319
      %v323 = vadd.f32 %v267, %v321
      %v324 = vsub.f32 -2.7725885, %v322
      %v325 = vsub.f32 -2.7725885, %v323
      %v326 = vadd.f32 %v324, %v151
      %v327 = vadd.f32 %v325, %v152
      %v328 = vsub.f32 %v326, %v151
      %v329 = vsub.f32 %v327, %v152
      %v330 = vperm.slane %v328, 0
      %v331 = vperm.slane %v329, 0
      %v332 = vadd.f32 %v153, %v330
      %v333 = vadd.f32 %v154, %v331
      %v334 = vsub.f32 %v240, %v149
      %v335 = vsub.f32 %v241, %v150
      %v336 = vand.u32 2147483647, %v334
      %v337 = vand.u32 2147483647, %v335
      %v339 = vperm.slane %v116, 0
      %v340 = vperm.slane %v116, 1
      %v343 = vmul.f32 %v336, %v339
      %v344 = vmul.f32 %v337, %v340
      %347 = vset.pattern.permute.xlu0 0
      %348 = vperm.xlu0 %347, %v343
      %v349 = vpop.permute.xlu0 %348
      %350 = vset.pattern.permute.xlu0 0
      %351 = vperm.xlu0 %350, %v344
      %v352 = vpop.permute.xlu0 %351
      %v353 = vlaneseq
      %v354 = vand.u32 %v353, 127
      %v355 = vperm.slane %v349, %v354
      %v356 = vperm.slane %v352, %v354
      %vm357 = vcmask 1041409
      %v358 = vsel %vm357, %v356, %v355
      %vm360 = vcmask 58368
      %v361 = vsel %vm360, %v358, 0.0
      %362 = vadd.xlane.f32.xlu0 %v361
      %v363 = vpop.xlane.xlu0 %362
      %v364 = vrot.slane %v363, 4
      %v365 = vadd.f32 %v363, %v364
      %v366 = vrot.slane %v365, 2
      %v367 = vadd.f32 %v365, %v366
      %v368 = vrot.slane %v367, 1
      %v369 = vadd.f32 %v367, %v368
      %s370 = vtos %v369
      %s371 = smul.f32 %s370, %s145
      %s372 = sadd.s32 %s147, 1
    $region14: #{tpu_custom_call.1} parent=1 // loop_footer
      _
    $region15: #{tpu_custom_call.1} parent=1 // loop_footer_branch
      %146 = sbr.rel target = $region11
    $region16: #{tpu_custom_call.1} parent=1 // loop_exit
      _
    %374 = vset.pattern.permute.xlu0 0
    %375 = vperm.xlu0 %374, %v149
    %v376 = vpop.permute.xlu0 %375
    %379 = vset.pattern.permute.xlu0 0
    %380 = vperm.xlu0 %379, %v150
    %v381 = vpop.permute.xlu0 %380
    %v383 = vadd.f32 %v153, %v376
    %v384 = vadd.f32 %v154, %v381
    %v385 = vmul.f32 %v383, 1.442695
    %v386 = vpow.pop %v385
    %v387 = vmul.f32 %v384, 1.442695
    %v388 = vpow.pop %v387
    %v389 = vmul.f32 %v107, -0.1
    %v390 = vmul.f32 %v108, -0.1
    %vm391 = vcmask 130048
    %392 = vst.msk [vmem:[#allocation6] sm:$0xff] %vm391, %v389
    %393 = vst.msk [vmem:[#allocation6 + $0x8] sm:$0xff] %vm391, %v390
    %394 = vst.msk [vmem:[#allocation4] sm:$0xff] %vm391, %v386
    %395 = vst.msk [vmem:[#allocation4 + $0x8] sm:$0xff] %vm391, %v388
    %v396 = vmul.f32 %v386, %v107
    %v397 = vmul.f32 %v388, %v108
    %v398 = vsel %vm391, %v396, 0.0
    %399 = vadd.xlane.f32.xlu0 %v398
    %v400 = vpop.xlane.xlu0 %399
    %v401 = vsel %vm391, %v397, 0.0
    %402 = vadd.xlane.f32.xlu0 %v401
    %v403 = vpop.xlane.xlu0 %402
    %v406 = vlaneseq
    %v407 = vand.u32 %v406, 127
    %v408 = vperm.slane %v400, %v407
    %v409 = vperm.slane %v403, %v407
    %vm410 = vcmask 1041409
    %v411 = vsel %vm410, %v409, %v408
    %vm413 = vcmask 58368
    %v414 = vsel %vm413, %v411, 0.0
    %415 = vadd.xlane.f32.xlu0 %v414
    %v416 = vpop.xlane.xlu0 %415
    %v417 = vmul.f32 %v416, -0.1
    %v419 = vperm.slane %v417, %v407
    %vm421 = vcmask 8192
    %422 = vst.msk [vmem:[#allocation2] sm:$0x1] %vm421, %v419
    // Predicated region
    $region17: #{tpu_custom_call.1} parent=1 // pred_check
      _
    $region18: #{tpu_custom_call.1} parent=1 // pred_check_branch
      %424 = sbr.rel (0) target = $region20
    $region19: #{tpu_custom_call.1} parent=1 // pred_region
      %426 = vsyncadd [#allocation3], 0
      %s428 = sshll.u32 [#allocation2], 4
      %s429 = int_to_ptr.vmem [resolvable:$true] %s428
      %s430 = sshll.u32 %s2, 4
      %s431 = int_to_ptr.hbm [resolvable:$true] %s430
      %433 = dma.vmem_to_hbm [thread:$0]  %s429, 16, %s431, [#allocation3]
    $region20: #{tpu_custom_call.1} parent=1 // pred_fallthru
      _
    // Predicated region
    $region21: #{tpu_custom_call.1} parent=1 // pred_check
      _
    $region22: #{tpu_custom_call.1} parent=1 // pred_check_branch
      %435 = sbr.rel (0) target = $region24
    $region23: #{tpu_custom_call.1} parent=1 // pred_region
      %437 = vsyncadd [#allocation5], 0
      %s438 = sshll.u32 [#allocation4], 4
      %s439 = int_to_ptr.vmem [resolvable:$true] %s438
      %s440 = sshll.u32 %s3, 4
      %s441 = int_to_ptr.hbm [resolvable:$true] %s440
      %446 = dma.vmem_to_hbm [thread:$0]  %s439, 256, %s441, [#allocation5], 128, 128, 8
    $region24: #{tpu_custom_call.1} parent=1 // pred_fallthru
      _
    // Predicated region
    $region25: #{tpu_custom_call.1} parent=1 // pred_check
      _
    $region26: #{tpu_custom_call.1} parent=1 // pred_check_branch
      %448 = sbr.rel (0) target = $region28
    $region27: #{tpu_custom_call.1} parent=1 // pred_region
      %450 = vsyncadd [#allocation5], 0
      %s451 = sshll.u32 [#allocation6], 4
      %s452 = int_to_ptr.vmem [resolvable:$true] %s451
      %s453 = sshll.u32 %s4, 4
      %s454 = int_to_ptr.hbm [resolvable:$true] %s453
      %459 = dma.vmem_to_hbm [thread:$0]  %s452, 256, %s454, [#allocation5], 128, 128, 8
    $region28: #{tpu_custom_call.1} parent=1 // pred_fallthru
      _
    // Predicated region
    $region29: #{tpu_custom_call.1} parent=1 // pred_check
      _
    $region30: #{tpu_custom_call.1} parent=1 // pred_check_branch
      %461 = sbr.rel (0) target = $region32
    $region31: #{tpu_custom_call.1} parent=1 // pred_region
      %463 = dma.done [#allocation3], 16
    $region32: #{tpu_custom_call.1} parent=1 // pred_fallthru
      _
    // Predicated region
    $region33: #{tpu_custom_call.1} parent=1 // pred_check
      _
    $region34: #{tpu_custom_call.1} parent=1 // pred_check_branch
      %465 = sbr.rel (0) target = $region36
    $region35: #{tpu_custom_call.1} parent=1 // pred_region
      %467 = dma.done [#allocation5], 256
    $region36: #{tpu_custom_call.1} parent=1 // pred_fallthru
      _
    // Predicated region
    $region37: #{tpu_custom_call.1} parent=1 // pred_check
      _
    $region38: #{tpu_custom_call.1} parent=1 // pred_check_branch
      %469 = sbr.rel (0) target = $region40
    $region39: #{tpu_custom_call.1} parent=1 // pred_region
      %471 = dma.done [#allocation5], 256
    $region40: #{tpu_custom_call.1} parent=1 // pred_fallthru
      _
    %472 = vsyncpa [#allocation3], 1
    %473 = vsyncpa [#allocation5], 1

</llo_original>
